<compile_context>
chip_gen: v5e
topology: v5e:2x2
jax: 0.10.0
libtpu: 0.0.40
codegen_flags: <defaults>
</compile_context>

<pallas_src>
import jax
import jax.numpy as jnp
from jax.experimental import pallas as pl
from jax.experimental.pallas import tpu as pltpu


def _vmem_budgets():
    """(vmem_limit_bytes, stream_budget_bytes) sized for the local TPU generation."""
    cap = 64 << 20                      # conservative fallback == v7x physical VMEM
    try:
        info = pltpu.get_tpu_info()
        cap = int(getattr(info, "vmem_capacity_bytes", cap)) or cap
    except Exception:
        pass
    # ~3/4 of physical: ~96 MiB on v5e/v6e (128 MiB), ~48 MiB on v7x (64 MiB),
    # leaving headroom for compiler-internal scratch.
    vmem_limit = min((cap * 3) // 4, 100 << 20)
    stream_budget = vmem_limit - (2 << 20)   # everything except the streamed x block
    return vmem_limit, stream_budget


def _pick_c_block(C, T, HW, itemsize, stream_budget):
    """Largest channel slab whose streamed block fits the per-generation budget."""
    # Per channel row: double-buffered input + one f32 working copy (covers a
    # possibly materialized bf16->f32 upcast ahead of the reduction).
    per_row = 2 * T * HW * itemsize + 4 * T * HW
    if C * per_row <= stream_budget:
        return C
    # c_blk < C must be a multiple of 8 so the (1, c_blk, T) output block keeps
    # its sublane dimension aligned / legal.
    cands = [d for d in range(8, C, 8) if C % d == 0]
    fitting = [d for d in cands if d * per_row <= stream_budget]
    if fitting:
        return max(fitting)
    # TODO(synk): add a T / spatial sub-chunk grid axis with partial-sum
    # accumulation if even the smallest 8-channel slab exceeds the VMEM budget.
    return min(cands) if cands else C


def _pool_kernel(x_ref, pooled_ref):
    # x_ref     : (1, c_blk, T, H*W)  lane-dense block of x
    # pooled_ref: (1, c_blk, T)       AdaptiveAvgPool3d((None, 1, 1)) rows
    x = x_ref[0].astype(jnp.float32)            # (c_blk, T, HW); no-op cast for f32
    pooled_ref[0] = jnp.mean(x, axis=-1)        # lane (XLU) reduction over H*W


def _conv_kernel(p_ref, w1_ref, b1_ref, w2_ref, b2_ref, o_ref):
    # p_ref : (1, C, T) pooled rows      w1_ref: (C8, C)   b1_ref: (C8, 1)
    # o_ref : (1, C, T) sigmoid weights  w2_ref: (C, C8)   b2_ref: (C, 1)
    p = p_ref[0]                                                        # (C, T)
    # Conv1d(C, C//8, k=1): per-timestep channel matmul.
    h = jnp.dot(w1_ref[...], p, preferred_element_type=jnp.float32) + b1_ref[...]
    # LeakyReLU(0.1)
    h = jnp.where(h >= 0, h, 0.1 * h)
    # Conv1d(C//8, C, k=1)
    z = jnp.dot(w2_ref[...], h, preferred_element_type=jnp.float32) + b2_ref[...]
    # Sigmoid
    o_ref[0] = (1.0 / (1.0 + jnp.exp(-z))).astype(o_ref.dtype)


def temporal_attention(x, w1, b1, w2, b2):
    """x: (B, C, T, H, W) float32/bfloat16. Returns (B, C, T, 1, 1) f32 weights."""
    B, C, T, H, W = x.shape
    C8 = w1.shape[0]
    assert w1.shape == (C8, C) and w2.shape == (C, C8)
    assert b1.shape == (C8,) and b2.shape == (C,)

    HW = H * W
    x_flat = x.reshape(B, C, T, HW)                 # free: contiguous reshape

    vmem_limit, stream_budget = _vmem_budgets()
    c_blk = _pick_c_block(C, T, HW, x.dtype.itemsize, stream_budget)
    n_cb = C // c_blk

    # Stage 1: spatial mean, streaming x at the HBM roofline.  Both grid axes
    # are independent (disjoint output blocks) -> fully parallel.
    pooled = pl.pallas_call(
        _pool_kernel,
        out_shape=jax.ShapeDtypeStruct((B, C, T), jnp.float32),
        grid_spec=pltpu.PrefetchScalarGridSpec(
            num_scalar_prefetch=0,
            grid=(B, n_cb),
            in_specs=[pl.BlockSpec((1, c_blk, T, HW), lambda b, cb: (b, cb, 0, 0))],
            out_specs=pl.BlockSpec((1, c_blk, T), lambda b, cb: (b, cb, 0)),
        ),
        compiler_params=pltpu.CompilerParams(
            dimension_semantics=("parallel", "parallel"),
            vmem_limit_bytes=vmem_limit,
        ),
    )(x_flat)

    # Stage 2: tiny per-batch conv1x1 -> LeakyReLU -> conv1x1 -> sigmoid epilogue.
    y_bct = pl.pallas_call(
        _conv_kernel,
        out_shape=jax.ShapeDtypeStruct((B, C, T), jnp.float32),
        grid_spec=pltpu.PrefetchScalarGridSpec(
            num_scalar_prefetch=0,
            grid=(B,),
            in_specs=[
                pl.BlockSpec((1, C, T), lambda b: (b, 0, 0)),
                pl.BlockSpec((C8, C), lambda b: (0, 0)),
                pl.BlockSpec((C8, 1), lambda b: (0, 0)),
                pl.BlockSpec((C, C8), lambda b: (0, 0)),
                pl.BlockSpec((C, 1), lambda b: (0, 0)),
            ],
            out_specs=pl.BlockSpec((1, C, T), lambda b: (b, 0, 0)),
        ),
        compiler_params=pltpu.CompilerParams(
            dimension_semantics=("parallel",),
        ),
    )(pooled, w1, b1.reshape(C8, 1), w2, b2.reshape(C, 1))

    # Tiny layout glue back to PyTorch's (B, C, T, 1, 1).
    return y_bct[..., None, None]


def _reference(x, w1, b1, w2, b2):
    """Pure-JAX reference of the PyTorch forward."""
    pooled = jnp.mean(x.astype(jnp.float32), axis=(3, 4))      # (B, C, T)
    h = jnp.einsum("oc,bct->bot", w1, pooled) + b1[None, :, None]
    h = jnp.where(h >= 0, h, 0.1 * h)
    z = jnp.einsum("oc,bct->bot", w2, h) + b2[None, :, None]
    return jax.nn.sigmoid(z)[..., None, None]


if __name__ == "__main__":
    # Small shapes consistent with the module (channels divisible by 8).
    B, C, T, H, W = 2, 32, 8, 16, 16
    C8 = C // 8

    key = jax.random.PRNGKey(0)
    kx, k1, kb1, k2, kb2 = jax.random.split(key, 5)

    x = jax.random.normal(kx, (B, C, T, H, W), dtype=jnp.float32)
    w1 = jax.random.normal(k1, (C8, C), dtype=jnp.float32) * 0.1   # Conv1d(C, C//8, 1)
    b1 = jax.random.normal(kb1, (C8,), dtype=jnp.float32) * 0.1
    w2 = jax.random.normal(k2, (C, C8), dtype=jnp.float32) * 0.1   # Conv1d(C//8, C, 1)
    b2 = jax.random.normal(kb2, (C,), dtype=jnp.float32) * 0.1

    y = jax.block_until_ready(temporal_attention(x, w1, b1, w2, b2))
    y_ref = _reference(x, w1, b1, w2, b2)
    assert y.shape == (B, C, T, 1, 1), y.shape
    assert jnp.max(jnp.abs(y - y_ref)) < 1e-5

    # bf16 streaming path: halves HBM traffic; pooling still accumulates in f32.
    y_bf16 = jax.block_until_ready(
        temporal_attention(x.astype(jnp.bfloat16), w1, b1, w2, b2))
    assert jnp.max(jnp.abs(y_bf16 - y_ref)) < 5e-2

    print("KERNEL_OK")
</pallas_src>

<mosaic_0001>
module attributes {stable_mosaic.version = 11 : i64} {
  func.func @_pool_kernel(%arg0: i32, %arg1: i32, %arg2: memref<1x32x8x256xf32, #tpu.memory_space<vmem>>, %arg3: memref<1x32x8xf32, #tpu.memory_space<vmem>>) attributes {dimension_semantics = [#tpu.dimension_semantics<parallel>, #tpu.dimension_semantics<parallel>], iteration_bounds = array<i64: 2, 1>, scalar_prefetch = 0 : i64, scratch_operands = 0 : i64, tpu.core_type = #tpu.core_type<tc>, window_params = [{transform_indices = @transform_0, window_bounds = array<i64: 1, 32, 8, 256>}, {transform_indices = @transform_1, window_bounds = array<i64: 1, 32, 8>}]} {
    %c0 = arith.constant 0 : index
    %c0_0 = arith.constant 0 : index
    %c0_1 = arith.constant 0 : index
    %c0_2 = arith.constant 0 : index
    %0 = vector.load %arg2[%c0, %c0_0, %c0_1, %c0_2] : memref<1x32x8x256xf32, #tpu.memory_space<vmem>>, vector<1x32x8x256xf32>
    %1 = vector.shape_cast %0 : vector<1x32x8x256xf32> to vector<32x8x256xf32>
    %cst = arith.constant dense<0.000000e+00> : vector<32x8xf32>
    %2 = vector.multi_reduction <add>, %1, %cst [2] : vector<32x8x256xf32> to vector<32x8xf32>
    %cst_3 = arith.constant 2.560000e+02 : f32
    %3 = vector.broadcast %cst_3 : f32 to vector<32x8xf32>
    %4 = arith.divf %2, %3 : vector<32x8xf32>
    %c0_4 = arith.constant 0 : index
    %c0_5 = arith.constant 0 : index
    %c0_6 = arith.constant 0 : index
    %5 = vector.load %arg3[%c0_4, %c0_5, %c0_6] : memref<1x32x8xf32, #tpu.memory_space<vmem>>, vector<1x32x8xf32>
    %6 = vector.shape_cast %5 : vector<1x32x8xf32> to vector<32x8xf32>
    %7 = vector.shape_cast %4 : vector<32x8xf32> to vector<1x32x8xf32>
    tpu.vector_store %arg3[%c0_4, %c0_5, %c0_6], %7 {strides = array<i32>} : memref<1x32x8xf32, #tpu.memory_space<vmem>>, vector<1x32x8xf32>,
    return
  }
  func.func @transform_0(%arg0: i32, %arg1: i32) -> (i32, i32, i32, i32) {
    %c0_i32 = arith.constant 0 : i32
    %c0_i32_0 = arith.constant 0 : i32
    %c0_i32_1 = arith.constant 0 : i32
    return %arg0, %arg1, %c0_i32, %c0_i32_0 : i32, i32, i32, i32
  }
  func.func @transform_1(%arg0: i32, %arg1: i32) -> (i32, i32, i32) {
    %c0_i32 = arith.constant 0 : i32
    %c0_i32_0 = arith.constant 0 : i32
    return %arg0, %arg1, %c0_i32 : i32, i32, i32
  }
}

</mosaic_0001>

<llo_original>
// kernel: tpu_custom_call.1
$region0: #{tpu_custom_call.1}
  #allocation0 [shape = 'u32[]', space=smem, size = 0x4, offset = 0x4, fixed_abs, tag = 'smem constant byte address 0x4 - core index']
  #allocation1 [shape = 'u32[72,128]{1,0:T(1,128)}', space=vmem, size = 0x9000, scoped, tag = 'internal scratch']
  %s0 = inlined_call_operand.hbm [shape: f32[2,32,8,256], index: 0, kind: input, shape index: {}]
  %s1 = inlined_call_operand.vmem [shape: f32[2,32,8], index: 1, kind: output, shape index: {}]
  %s2 = sld [smem:[#allocation0]]
  $region41: #{tpu_custom_call.1} parent=0
    _
  %s4 = ssub.s32 1, %s2
  %s5 = scalar_select 0, %s4, %s2
  $region1: #{tpu_custom_call.1} parent=0
    #allocation2 [shape = 'u8[524288]{0}', space=vmem, size = 0x80000, scoped, tag = 'input window, operand 0']
    #allocation3 [shape = 's32[2]{0}', space=sflag, size = 0x8, scoped, tag = 'scoped memory for tpu_custom_call.1']
    %6 = vsyncpa [#allocation3], 0
    %s7 = scalar_lea.sflag [#allocation3], 1
    %8 = vsyncpa %s7, 0
    loop: start=0, step=1, limit=4
    $region2: #{tpu_custom_call.1} parent=1 // loop_pre_header
      _
    $region3: #{tpu_custom_call.1} parent=1 // loop_header
      %s10 = sphi 0, %s14
      %p11 = scmp.ge.s32.totalorder %s10, 4
      %s17 = sphi 0, %s29
      %s18 = sphi 0, %s25
      %s19 = sphi 0, %s17
      %s20 = sphi 0, %s18
      %s21 = sphi 0, %s19
      %s22 = sphi 0, %s20
      %s34 = sphi 0, %s36
      %s37 = sphi 0, %s34
      %s38 = sphi 0, %s37
      %s54 = sphi 0, %s38
      %s62 = sphi 0, %s64
      %s65 = sphi 0, %s62
      %s66 = sphi 0, %s65
      %s82 = sphi 0, %s66
    $region4: #{tpu_custom_call.1} parent=1 // loop_header_branch
      %13 = sbr.rel (%p11) target = $region8
    $region5: #{tpu_custom_call.1} parent=1 // loop_body
      %s15 = ssub.s32 %s10, 1
      %s16 = ssub.s32 %s10, 2
      %s23 = sadd.s32 1, %s18
      %p24 = scmp.ge.s32.totalorder %s23, 1
      %s25 = scalar_select %p24, 0, %s23
      %s26 = sadd.s32 1, %s17
      %s27 = scalar_select %p24, %s26, %s17
      %p28 = scmp.ge.s32.totalorder %s27, 2
      %s29 = scalar_select %p28, 0, %s27
      %s30 = ssub.s32 %s17, %s29
      %s31 = ssub.s32 %s18, %s25
      %s32 = sor.u32 %s30, %s31
      %p33 = scmp.eq.s32.totalorder %s32, 0
      %s35 = sadd.s32 %s34, 1
      %s36 = scalar_select %p33, %s34, %s35
      %p39 = pneg %p33
      %p40 = scmp.eq.s32.totalorder %s10, 1
      %p41 = por %p39, %p40
      %p42 = scmp.ne.s32.totalorder %s34, %s37
      %p43 = scmp.eq.s32.totalorder %s10, 0
      %p44 = por %p42, %p43
      %p45 = scmp.ne.s32.totalorder %s34, %s37
      %p46 = scmp.eq.s32.totalorder %s15, 1
      %p47 = por %p45, %p46
      %p48 = scmp.ne.s32.totalorder %s37, %s38
      %p49 = scmp.eq.s32.totalorder %s15, 0
      %p50 = por %p48, %p49
      %p51 = scmp.ne.s32.totalorder %s37, %s38
      %p52 = scmp.eq.s32.totalorder %s16, 1
      %p53 = por %p51, %p52
      %p55 = scmp.ne.s32.totalorder %s38, %s54
      %p56 = scmp.eq.s32.totalorder %s16, 0
      %p57 = por %p55, %p56
      %s58 = ssub.s32 %s17, %s29
      %s59 = ssub.s32 %s18, %s25
      %s60 = sor.u32 %s58, %s59
      %p61 = scmp.eq.s32.totalorder %s60, 0
      %s63 = sadd.s32 %s62, 1
      %s64 = scalar_select %p61, %s62, %s63
      %p67 = pneg %p61
      %p68 = scmp.eq.s32.totalorder %s10, 1
      %p69 = por %p67, %p68
      %p70 = scmp.ne.s32.totalorder %s62, %s65
      %p71 = scmp.eq.s32.totalorder %s10, 0
      %p72 = por %p70, %p71
      %p73 = scmp.ne.s32.totalorder %s62, %s65
      %p74 = scmp.eq.s32.totalorder %s15, 1
      %p75 = por %p73, %p74
      %p76 = scmp.ne.s32.totalorder %s65, %s66
      %p77 = scmp.eq.s32.totalorder %s15, 0
      %p78 = por %p76, %p77
      %p79 = scmp.ne.s32.totalorder %s65, %s66
      %p80 = scmp.eq.s32.totalorder %s16, 1
      %p81 = por %p79, %p80
      %p83 = scmp.ne.s32.totalorder %s66, %s82
      %p84 = scmp.eq.s32.totalorder %s16, 0
      %p85 = por %p83, %p84
      %p86 = scmp.le.s32.totalorder 1, %s10
      %p87 = scmp.lt.s32.totalorder %s10, 3
      %p88 = pnand %p86, %p87
      %p89 = pneg %p88
      // Predicated region
      $region9: #{tpu_custom_call.1} parent=5 // pred_check
        _
      $region10: #{tpu_custom_call.1} parent=5 // pred_check_branch
        %91 = sbr.rel (%p88) target = $region12
      $region11: #{tpu_custom_call.1} parent=5 // pred_region
        %s92 = ssub.s32 %s10, 1
      $region12: #{tpu_custom_call.1} parent=5 // pred_fallthru
        _
      %p93 = scmp.lt.s32.totalorder %s10, 2
      // Predicated region
      $region13: #{tpu_custom_call.1} parent=5 // pred_check
        %p94 = pneg %p93
      $region14: #{tpu_custom_call.1} parent=5 // pred_check_branch
        %96 = sbr.rel (%p94) target = $region16
      $region15: #{tpu_custom_call.1} parent=5 // pred_region
        // Predicated region
        $region17: #{tpu_custom_call.1} parent=15 // pred_check
          %p97 = pneg %p44
        $region18: #{tpu_custom_call.1} parent=15 // pred_check_branch
          %99 = sbr.rel (%p97) target = $region20
        $region19: #{tpu_custom_call.1} parent=15 // pred_region
          %s100 = sand.u32 %s34, 1
          %s101 = scalar_lea.sflag [#allocation3], %s100
          %s102 = sand.u32 %s34, 1
          %s103 = smul.addr %s102, 512
          %s104 = scalar_lea.vmem [#allocation2], %s103
          %s105 = smul.u32 32, %s18
          %107 = vsyncadd %s101, 0
          %s108 = smul.addr %s105, 2
          %s109 = smul.addr %s17, 64
          %s110 = sadd.s32 %s108, %s109
          %s111 = smul.addr %s110, 8
          %s112 = scalar_lea.hbm %s0, %s111
          %s113 = sshll.u32 %s112, 4
          %s114 = int_to_ptr.hbm [resolvable:$true] %s113
          %s115 = sshll.u32 %s104, 4
          %s116 = int_to_ptr.vmem [resolvable:$true] %s115
          %121 = dma.hbm_to_vmem [thread:$0]  %s114, 8192, %s116, %s101, 256, 256, 16
        $region20: #{tpu_custom_call.1} parent=15 // pred_fallthru
          _
      $region16: #{tpu_custom_call.1} parent=5 // pred_fallthru
        _
      %p122 = scmp.le.s32.totalorder 1, %s10
      %p123 = scmp.lt.s32.totalorder %s10, 3
      %p124 = pnand %p122, %p123
      %p125 = pneg %p124
      // Predicated region
      $region21: #{tpu_custom_call.1} parent=5 // pred_check
        _
      $region22: #{tpu_custom_call.1} parent=5 // pred_check_branch
        %127 = sbr.rel (%p124) target = $region24
      $region23: #{tpu_custom_call.1} parent=5 // pred_region
        %s128 = ssub.s32 %s10, 1
        %s129 = sand.u32 %s37, 1
        %s130 = scalar_lea.sflag [#allocation3], %s129
        %s131 = sand.u32 %s37, 1
        %s132 = smul.addr %s131, 512
        %s133 = scalar_lea.vmem [#allocation2], %s132
        // Predicated region
        $region25: #{tpu_custom_call.1} parent=23 // pred_check
          %p134 = pneg %p50
        $region26: #{tpu_custom_call.1} parent=23 // pred_check_branch
          %136 = sbr.rel (%p134) target = $region28
        $region27: #{tpu_custom_call.1} parent=23 // pred_region
          %138 = dma.done %s130, 8192
        $region28: #{tpu_custom_call.1} parent=23 // pred_fallthru
          _
        %s139 = sand.u32 %s37, 1
        %s140 = scalar_lea.sflag [#allocation3], %s139
        %s141 = sand.u32 %s37, 1
        %s142 = smul.addr %s141, 512
        %s143 = scalar_lea.vmem [#allocation2], %s142
        %p144 = pneg %p50
        %p145 = pneg %p47
        %p146 = pneg %p78
        %p147 = pneg %p75
        %s148 = smul.u32 4, %s20
        %p149 = scmp.lt.s32.totalorder %s19, 1
        %s150 = scalar_select %p149, %s19, 1
        %p151 = scmp.lt.s32.totalorder %s148, 3
        %s152 = scalar_select %p151, %s148, 3
        %s153 = smul.addr %s150, 4
        %s154 = sadd.s32 %s152, %s153
        %s155 = smul.addr %s154, 8
        %s156 = scalar_lea.vmem %s1, %s155
        %s157 = smul.u32 32, %s20
        %s158 = smul.u32 4, %s20
        %p159 = scmp.lt.s32.totalorder %s19, 1
        %s160 = scalar_select %p159, %s19, 1
        %p161 = scmp.lt.s32.totalorder %s158, 3
        %s162 = scalar_select %p161, %s158, 3
        %s163 = smul.addr %s160, 4
        %s164 = sadd.s32 %s162, %s163
        %s165 = smul.addr %s164, 8
        %s166 = scalar_lea.vmem %s1, %s165
        %s167 = smul.u32 4, %s20
        %v168 = vld [vmem:[%s133] sm:$0xff]
        %v169 = vld [vmem:[%s133 + $0x8] sm:$0xff]
        %v170 = vld [vmem:[%s133 + $0x10] sm:$0xff]
        %v171 = vld [vmem:[%s133 + $0x18] sm:$0xff]
        %v172 = vld [vmem:[%s133 + $0x20] sm:$0xff]
        %v173 = vld [vmem:[%s133 + $0x28] sm:$0xff]
        %v174 = vld [vmem:[%s133 + $0x30] sm:$0xff]
        %v175 = vld [vmem:[%s133 + $0x38] sm:$0xff]
        %v176 = vld [vmem:[%s133 + $0x40] sm:$0xff]
        %v177 = vld [vmem:[%s133 + $0x48] sm:$0xff]
        %v178 = vld [vmem:[%s133 + $0x50] sm:$0xff]
        %v179 = vld [vmem:[%s133 + $0x58] sm:$0xff]
        %v180 = vld [vmem:[%s133 + $0x60] sm:$0xff]
        %v181 = vld [vmem:[%s133 + $0x68] sm:$0xff]
        %v182 = vld [vmem:[%s133 + $0x70] sm:$0xff]
        %v183 = vld [vmem:[%s133 + $0x78] sm:$0xff]
        %v184 = vld [vmem:[%s133 + $0x80] sm:$0xff]
        %v185 = vld [vmem:[%s133 + $0x88] sm:$0xff]
        %v186 = vld [vmem:[%s133 + $0x90] sm:$0xff]
        %v187 = vld [vmem:[%s133 + $0x98] sm:$0xff]
        %v188 = vld [vmem:[%s133 + $0xa0] sm:$0xff]
        %v189 = vld [vmem:[%s133 + $0xa8] sm:$0xff]
        %v190 = vld [vmem:[%s133 + $0xb0] sm:$0xff]
        %v191 = vld [vmem:[%s133 + $0xb8] sm:$0xff]
        %v192 = vld [vmem:[%s133 + $0xc0] sm:$0xff]
        %v193 = vld [vmem:[%s133 + $0xc8] sm:$0xff]
        %v194 = vld [vmem:[%s133 + $0xd0] sm:$0xff]
        %v195 = vld [vmem:[%s133 + $0xd8] sm:$0xff]
        %v196 = vld [vmem:[%s133 + $0xe0] sm:$0xff]
        %v197 = vld [vmem:[%s133 + $0xe8] sm:$0xff]
        %v198 = vld [vmem:[%s133 + $0xf0] sm:$0xff]
        %v199 = vld [vmem:[%s133 + $0xf8] sm:$0xff]
        %v200 = vld [vmem:[%s133 + $0x100] sm:$0xff]
        %v201 = vld [vmem:[%s133 + $0x108] sm:$0xff]
        %v202 = vld [vmem:[%s133 + $0x110] sm:$0xff]
        %v203 = vld [vmem:[%s133 + $0x118] sm:$0xff]
        %v204 = vld [vmem:[%s133 + $0x120] sm:$0xff]
        %v205 = vld [vmem:[%s133 + $0x128] sm:$0xff]
        %v206 = vld [vmem:[%s133 + $0x130] sm:$0xff]
        %v207 = vld [vmem:[%s133 + $0x138] sm:$0xff]
        %v208 = vld [vmem:[%s133 + $0x140] sm:$0xff]
        %v209 = vld [vmem:[%s133 + $0x148] sm:$0xff]
        %v210 = vld [vmem:[%s133 + $0x150] sm:$0xff]
        %v211 = vld [vmem:[%s133 + $0x158] sm:$0xff]
        %v212 = vld [vmem:[%s133 + $0x160] sm:$0xff]
        %v213 = vld [vmem:[%s133 + $0x168] sm:$0xff]
        %v214 = vld [vmem:[%s133 + $0x170] sm:$0xff]
        %v215 = vld [vmem:[%s133 + $0x178] sm:$0xff]
        %v216 = vld [vmem:[%s133 + $0x180] sm:$0xff]
        %v217 = vld [vmem:[%s133 + $0x188] sm:$0xff]
        %v218 = vld [vmem:[%s133 + $0x190] sm:$0xff]
        %v219 = vld [vmem:[%s133 + $0x198] sm:$0xff]
        %v220 = vld [vmem:[%s133 + $0x1a0] sm:$0xff]
        %v221 = vld [vmem:[%s133 + $0x1a8] sm:$0xff]
        %v222 = vld [vmem:[%s133 + $0x1b0] sm:$0xff]
        %v223 = vld [vmem:[%s133 + $0x1b8] sm:$0xff]
        %v224 = vld [vmem:[%s133 + $0x1c0] sm:$0xff]
        %v225 = vld [vmem:[%s133 + $0x1c8] sm:$0xff]
        %v226 = vld [vmem:[%s133 + $0x1d0] sm:$0xff]
        %v227 = vld [vmem:[%s133 + $0x1d8] sm:$0xff]
        %v228 = vld [vmem:[%s133 + $0x1e0] sm:$0xff]
        %v229 = vld [vmem:[%s133 + $0x1e8] sm:$0xff]
        %v230 = vld [vmem:[%s133 + $0x1f0] sm:$0xff]
        %v231 = vld [vmem:[%s133 + $0x1f8] sm:$0xff]
        %v232 = vadd.f32 %v168, %v169
        %233 = vadd.xlane.f32.xlu0 %v232
        %v234 = vpop.xlane.xlu0 %233
        %v235 = vadd.f32 %v170, %v171
        %236 = vadd.xlane.f32.xlu0 %v235
        %v237 = vpop.xlane.xlu0 %236
        %v238 = vadd.f32 %v172, %v173
        %239 = vadd.xlane.f32.xlu0 %v238
        %v240 = vpop.xlane.xlu0 %239
        %v241 = vadd.f32 %v174, %v175
        %242 = vadd.xlane.f32.xlu0 %v241
        %v243 = vpop.xlane.xlu0 %242
        %v244 = vadd.f32 %v176, %v177
        %245 = vadd.xlane.f32.xlu0 %v244
        %v246 = vpop.xlane.xlu0 %245
        %v247 = vadd.f32 %v178, %v179
        %248 = vadd.xlane.f32.xlu0 %v247
        %v249 = vpop.xlane.xlu0 %248
        %v250 = vadd.f32 %v180, %v181
        %251 = vadd.xlane.f32.xlu0 %v250
        %v252 = vpop.xlane.xlu0 %251
        %v253 = vadd.f32 %v182, %v183
        %254 = vadd.xlane.f32.xlu0 %v253
        %v255 = vpop.xlane.xlu0 %254
        %v256 = vadd.f32 %v184, %v185
        %257 = vadd.xlane.f32.xlu0 %v256
        %v258 = vpop.xlane.xlu0 %257
        %v259 = vadd.f32 %v186, %v187
        %260 = vadd.xlane.f32.xlu0 %v259
        %v261 = vpop.xlane.xlu0 %260
        %v262 = vadd.f32 %v188, %v189
        %263 = vadd.xlane.f32.xlu0 %v262
        %v264 = vpop.xlane.xlu0 %263
        %v265 = vadd.f32 %v190, %v191
        %266 = vadd.xlane.f32.xlu0 %v265
        %v267 = vpop.xlane.xlu0 %266
        %v268 = vadd.f32 %v192, %v193
        %269 = vadd.xlane.f32.xlu0 %v268
        %v270 = vpop.xlane.xlu0 %269
        %v271 = vadd.f32 %v194, %v195
        %272 = vadd.xlane.f32.xlu0 %v271
        %v273 = vpop.xlane.xlu0 %272
        %v274 = vadd.f32 %v196, %v197
        %275 = vadd.xlane.f32.xlu0 %v274
        %v276 = vpop.xlane.xlu0 %275
        %v277 = vadd.f32 %v198, %v199
        %278 = vadd.xlane.f32.xlu0 %v277
        %v279 = vpop.xlane.xlu0 %278
        %v280 = vadd.f32 %v200, %v201
        %281 = vadd.xlane.f32.xlu0 %v280
        %v282 = vpop.xlane.xlu0 %281
        %v283 = vadd.f32 %v202, %v203
        %284 = vadd.xlane.f32.xlu0 %v283
        %v285 = vpop.xlane.xlu0 %284
        %v286 = vadd.f32 %v204, %v205
        %287 = vadd.xlane.f32.xlu0 %v286
        %v288 = vpop.xlane.xlu0 %287
        %v289 = vadd.f32 %v206, %v207
        %290 = vadd.xlane.f32.xlu0 %v289
        %v291 = vpop.xlane.xlu0 %290
        %v292 = vadd.f32 %v208, %v209
        %293 = vadd.xlane.f32.xlu0 %v292
        %v294 = vpop.xlane.xlu0 %293
        %v295 = vadd.f32 %v210, %v211
        %296 = vadd.xlane.f32.xlu0 %v295
        %v297 = vpop.xlane.xlu0 %296
        %v298 = vadd.f32 %v212, %v213
        %299 = vadd.xlane.f32.xlu0 %v298
        %v300 = vpop.xlane.xlu0 %299
        %v301 = vadd.f32 %v214, %v215
        %302 = vadd.xlane.f32.xlu0 %v301
        %v303 = vpop.xlane.xlu0 %302
        %v304 = vadd.f32 %v216, %v217
        %305 = vadd.xlane.f32.xlu0 %v304
        %v306 = vpop.xlane.xlu0 %305
        %v307 = vadd.f32 %v218, %v219
        %308 = vadd.xlane.f32.xlu0 %v307
        %v309 = vpop.xlane.xlu0 %308
        %v310 = vadd.f32 %v220, %v221
        %311 = vadd.xlane.f32.xlu0 %v310
        %v312 = vpop.xlane.xlu0 %311
        %v313 = vadd.f32 %v222, %v223
        %314 = vadd.xlane.f32.xlu0 %v313
        %v315 = vpop.xlane.xlu0 %314
        %v316 = vadd.f32 %v224, %v225
        %317 = vadd.xlane.f32.xlu0 %v316
        %v318 = vpop.xlane.xlu0 %317
        %v319 = vadd.f32 %v226, %v227
        %320 = vadd.xlane.f32.xlu0 %v319
        %v321 = vpop.xlane.xlu0 %320
        %v322 = vadd.f32 %v228, %v229
        %323 = vadd.xlane.f32.xlu0 %v322
        %v324 = vpop.xlane.xlu0 %323
        %v325 = vadd.f32 %v230, %v231
        %326 = vadd.xlane.f32.xlu0 %v325
        %v327 = vpop.xlane.xlu0 %326
        %v328 = vrcp.pop 256.0
        %v329 = vmul.f32 256.0, %v328
        %v330 = vsub.f32 1.0, %v329
        %v331 = vmul.f32 %v328, %v330
        %v332 = vadd.f32 %v328, %v331
        %vm333 = vweird.f32 %v328
        %v334 = vsel %vm333, %v328, %v332
        %v335 = vmul.f32 %v234, %v334
        %v336 = vmul.f32 %v237, %v334
        %v337 = vmul.f32 %v240, %v334
        %v338 = vmul.f32 %v243, %v334
        %v339 = vmul.f32 %v246, %v334
        %v340 = vmul.f32 %v249, %v334
        %v341 = vmul.f32 %v252, %v334
        %v342 = vmul.f32 %v255, %v334
        %v343 = vmul.f32 %v258, %v334
        %v344 = vmul.f32 %v261, %v334
        %v345 = vmul.f32 %v264, %v334
        %v346 = vmul.f32 %v267, %v334
        %v347 = vmul.f32 %v270, %v334
        %v348 = vmul.f32 %v273, %v334
        %v349 = vmul.f32 %v276, %v334
        %v350 = vmul.f32 %v279, %v334
        %v351 = vmul.f32 %v282, %v334
        %v352 = vmul.f32 %v285, %v334
        %v353 = vmul.f32 %v288, %v334
        %v354 = vmul.f32 %v291, %v334
        %v355 = vmul.f32 %v294, %v334
        %v356 = vmul.f32 %v297, %v334
        %v357 = vmul.f32 %v300, %v334
        %v358 = vmul.f32 %v303, %v334
        %v359 = vmul.f32 %v306, %v334
        %v360 = vmul.f32 %v309, %v334
        %v361 = vmul.f32 %v312, %v334
        %v362 = vmul.f32 %v315, %v334
        %v363 = vmul.f32 %v318, %v334
        %v364 = vmul.f32 %v321, %v334
        %v365 = vmul.f32 %v324, %v334
        %v366 = vmul.f32 %v327, %v334
        %v399 = vlaneseq
        %v400 = vand.u32 %v399, 127
        %v401 = vperm.slane %v335, %v400
        %v402 = vperm.slane %v336, %v400
        %v403 = vperm.slane %v337, %v400
        %v404 = vperm.slane %v338, %v400
        %v405 = vperm.slane %v339, %v400
        %v406 = vperm.slane %v340, %v400
        %v407 = vperm.slane %v341, %v400
        %v408 = vperm.slane %v342, %v400
        %v409 = vperm.slane %v343, %v400
        %v410 = vperm.slane %v344, %v400
        %v411 = vperm.slane %v345, %v400
        %v412 = vperm.slane %v346, %v400
        %v413 = vperm.slane %v347, %v400
        %v414 = vperm.slane %v348, %v400
        %v415 = vperm.slane %v349, %v400
        %v416 = vperm.slane %v350, %v400
        %v417 = vperm.slane %v351, %v400
        %v418 = vperm.slane %v352, %v400
        %v419 = vperm.slane %v353, %v400
        %v420 = vperm.slane %v354, %v400
        %v421 = vperm.slane %v355, %v400
        %v422 = vperm.slane %v356, %v400
        %v423 = vperm.slane %v357, %v400
        %v424 = vperm.slane %v358, %v400
        %v425 = vperm.slane %v359, %v400
        %v426 = vperm.slane %v360, %v400
        %v427 = vperm.slane %v361, %v400
        %v428 = vperm.slane %v362, %v400
        %v429 = vperm.slane %v363, %v400
        %v430 = vperm.slane %v364, %v400
        %v431 = vperm.slane %v365, %v400
        %v432 = vperm.slane %v366, %v400
        %vm433 = vcmask 1041409
        %v434 = vsel %vm433, %v402, %v401
        %vm435 = vcmask 1042434
        %v436 = vsel %vm435, %v403, %v434
        %vm437 = vcmask 1043459
        %v438 = vsel %vm437, %v404, %v436
        %vm439 = vcmask 1044484
        %v440 = vsel %vm439, %v405, %v438
        %vm441 = vcmask 1045509
        %v442 = vsel %vm441, %v406, %v440
        %vm443 = vcmask 1046534
        %v444 = vsel %vm443, %v407, %v442
        %vm445 = vcmask 1047559
        %v446 = vsel %vm445, %v408, %v444
        %v447 = vsel %vm433, %v410, %v409
        %v448 = vsel %vm435, %v411, %v447
        %v449 = vsel %vm437, %v412, %v448
        %v450 = vsel %vm439, %v413, %v449
        %v451 = vsel %vm441, %v414, %v450
        %v452 = vsel %vm443, %v415, %v451
        %v453 = vsel %vm445, %v416, %v452
        %v454 = vsel %vm433, %v418, %v417
        %v455 = vsel %vm435, %v419, %v454
        %v456 = vsel %vm437, %v420, %v455
        %v457 = vsel %vm439, %v421, %v456
        %v458 = vsel %vm441, %v422, %v457
        %v459 = vsel %vm443, %v423, %v458
        %v460 = vsel %vm445, %v424, %v459
        %v461 = vsel %vm433, %v426, %v425
        %v462 = vsel %vm435, %v427, %v461
        %v463 = vsel %vm437, %v428, %v462
        %v464 = vsel %vm439, %v429, %v463
        %v465 = vsel %vm441, %v430, %v464
        %v466 = vsel %vm443, %v431, %v465
        %v467 = vsel %vm445, %v432, %v466
        %vm472 = vcmask 64512
        %473 = vst.msk [vmem:[%s166] sm:$0xff] %vm472, %v446
        %474 = vst.msk [vmem:[%s166 + $0x8] sm:$0xff] %vm472, %v453
        %475 = vst.msk [vmem:[%s166 + $0x10] sm:$0xff] %vm472, %v460
        %476 = vst.msk [vmem:[%s166 + $0x18] sm:$0xff] %vm472, %v467
        %s477 = smul.u32 4, %s20
        %p478 = scmp.lt.s32.totalorder %s19, 1
        %s479 = scalar_select %p478, %s19, 1
        %p480 = scmp.lt.s32.totalorder %s477, 3
        %s481 = scalar_select %p480, %s477, 3
        %s482 = smul.addr %s479, 4
        %s483 = sadd.s32 %s481, %s482
        %s484 = smul.addr %s483, 8
        %s485 = scalar_lea.vmem %s1, %s484
        // Predicated region
        $region29: #{tpu_custom_call.1} parent=23 // pred_check
          %p486 = pneg %p75
        $region30: #{tpu_custom_call.1} parent=23 // pred_check_branch
          %488 = sbr.rel (%p486) target = $region32
        $region31: #{tpu_custom_call.1} parent=23 // pred_region
          %s489 = smul.u32 4, %s20
        $region32: #{tpu_custom_call.1} parent=23 // pred_fallthru
          _
      $region24: #{tpu_custom_call.1} parent=5 // pred_fallthru
        _
      %p490 = scmp.le.s32.totalorder 2, %s10
      // Predicated region
      $region33: #{tpu_custom_call.1} parent=5 // pred_check
        %p491 = pneg %p490
      $region34: #{tpu_custom_call.1} parent=5 // pred_check_branch
        %493 = sbr.rel (%p491) target = $region36
      $region35: #{tpu_custom_call.1} parent=5 // pred_region
        %s494 = ssub.s32 %s10, 2
        // Predicated region
        $region37: #{tpu_custom_call.1} parent=35 // pred_check
          %p495 = pneg %p81
        $region38: #{tpu_custom_call.1} parent=35 // pred_check_branch
          %497 = sbr.rel (%p495) target = $region40
        $region39: #{tpu_custom_call.1} parent=35 // pred_region
          %s498 = smul.u32 4, %s22
          %p499 = scmp.lt.s32.totalorder %s21, 1
          %s500 = scalar_select %p499, %s21, 1
          %p501 = scmp.lt.s32.totalorder %s498, 3
          %s502 = scalar_select %p501, %s498, 3
          %s503 = smul.addr %s500, 4
          %s504 = sadd.s32 %s502, %s503
          %s505 = smul.addr %s504, 8
          %s506 = scalar_lea.vmem %s1, %s505
        $region40: #{tpu_custom_call.1} parent=35 // pred_fallthru
          _
      $region36: #{tpu_custom_call.1} parent=5 // pred_fallthru
        _
    $region6: #{tpu_custom_call.1} parent=1 // loop_footer
      %s14 = sadd.s32 1, %s10
    $region7: #{tpu_custom_call.1} parent=1 // loop_footer_branch
      %9 = sbr.rel target = $region3
    $region8: #{tpu_custom_call.1} parent=1 // loop_exit
      _
    %507 = vsyncpa [#allocation3], 1
    %s508 = scalar_lea.sflag [#allocation3], 1
    %509 = vsyncpa %s508, 1

</llo_original>
